<compile_context>
chip_gen: v5e
topology: v5e:2x2
jax: 0.10.0
libtpu: 0.0.40
codegen_flags: <defaults>
</compile_context>

<pallas_src>
import jax
import jax.numpy as jnp
from jax.experimental import pallas as pl
from jax.experimental.pallas import tpu as pltpu

# ------------------------- problem sizes (small) -------------------------
N = 16    # nodes per graph-batch instance
F = 32    # input node-feature dim
H = 32    # hidden dim (backbone / neck output)
B = 2     # graphs per instance
U = 8     # graph-level feature dim (u)
C = 4     # head output classes
E = 32    # edges per instance

HU = H + U                # widened lane width carried through the backbone
OUT_LANES = 128           # lane-dense output width (real logits in cols [0, C))
B_PAD = 8                 # graph rows padded to the f32 sublane tile
DF_ROWS = 8 + B_PAD       # float slab rows: row 0 = edge_weight, rows [8,16) = u
R_U = 8                   # sublane-aligned row offset of u inside the df slab


def _align(v, m):
    return ((v + m - 1) // m) * m


# -------- packed parameter slab layout (row offsets, 8-aligned) -----------
R_WB = 0                      # W_b  : rows [R_WB,  R_WB +F),  cols [0, H)
R_WN1 = _align(R_WB + F, 8)   # W_n1 : rows [R_WN1, R_WN1+H),  cols [0, H)
R_WN2 = R_WN1 + H             # W_n2 : rows [R_WN2, R_WN2+U),  cols [0, H)
R_WH = _align(R_WN2 + U, 8)   # W_h  : rows [R_WH,  R_WH +H),  cols [0, C), rest 0
R_BB = _align(R_WH + H, 8)    # b_b  : row R_BB, cols [0, H)
R_BN = R_BB + 8               # b_n  : row R_BN, cols [0, H)
R_BH = R_BN + 8               # b_h  : row R_BH, cols [0, C), rest 0
P_ROWS = R_BH + 8             # = 128 at these sizes
P_COLS = OUT_LANES

# W_n1 / W_n2 must be row-contiguous for the single fused neck matmul, and all
# slab slices must stay sublane-aligned.
assert F % 8 == 0 and H % 8 == 0 and R_WN2 == R_WN1 + H
assert B <= B_PAD and HU <= P_COLS


# ------------------------------ Pallas kernel -----------------------------
def gnn_kernel(x_ref, meta_ref, srcc_ref, df_ref, p_ref, out_ref):
    """One graph-batch instance per grid step (whole instance fits in VMEM)."""
    f32 = jnp.float32
    bf16 = jnp.bfloat16
    n = x_ref.shape[0]           # nodes in this instance
    wm = meta_ref.shape[1]       # padded edge-list width (>= max(N, E))

    # ---- static views into the grid-resident bf16 parameter slab ----
    wb = p_ref[R_WB:R_WB + F, 0:HU]               # (F, HU), cols >= H are zero
    wn12 = p_ref[R_WN1:R_WN1 + HU, 0:H]           # (HU, H) = [W_n1 ; W_n2]
    wh = p_ref[R_WH:R_WH + H, :]                  # (H, 128), cols >= C zero
    bb = p_ref[R_BB:R_BB + 1, 0:HU].astype(f32)   # (1, HU), cols >= H zero
    bn = p_ref[R_BN:R_BN + 1, 0:H].astype(f32)    # (1, H)
    bh = p_ref[R_BH:R_BH + 1, :].astype(f32)      # (1, 128), cols >= C zero

    dst = meta_ref[0:1, :]                        # (1, wm) int32 (row layout)
    batch = meta_ref[1:2, 0:n]                    # (1, n)  int32 (row layout)
    src_col = srcc_ref[...]                       # (wm, 1) int32 (column layout)
    ew = df_ref[0:1, 0:wm]                        # (1, wm), padded edges weight 0
    u_sh = df_ref[R_U:R_U + B_PAD, 0:HU]          # (B_PAD, HU), u in lanes [H, HU)

    # ---- backbone: z = ReLU( D^-1 (A+I) (x W_b) + b_b ), no dense NxN adj ----
    xw = jnp.dot(x_ref[...], wb, preferred_element_type=f32)          # (n, HU)
    # per-edge gather of source features as a matmul; the src one-hot is built
    # already transposed (edge-major), so no XLU transpose on the chain.
    e_nodes = jax.lax.broadcasted_iota(jnp.int32, (wm, n), 1)
    src_oh_t = (e_nodes == src_col).astype(bf16)                       # (wm, n)
    gathered = jnp.dot(src_oh_t, xw.astype(bf16),
                       preferred_element_type=f32)                     # (wm, HU)
    # weighted scatter to destination nodes
    n_nodes = jax.lax.broadcasted_iota(jnp.int32, (n, wm), 0)
    w_dst = (n_nodes == dst).astype(f32) * ew                          # (n, wm)
    agg = jnp.dot(w_dst.astype(bf16), gathered.astype(bf16),
                  preferred_element_type=f32) + xw                     # + self loop
    deg = jnp.sum(w_dst, axis=1, keepdims=True) + 1.0                  # (n, 1)
    inv_deg = pl.reciprocal(jnp.maximum(deg, 1e-12), approx=True)
    z = jnp.maximum(agg * inv_deg + bb, 0.0)                           # cols>=H stay 0

    # ---- neck: per-graph mean pooling + graph feature u, ONE fused matmul ----
    g_ids = jax.lax.broadcasted_iota(jnp.int32, (B_PAD, n), 0)
    one_hot = (g_ids == batch).astype(f32)                             # (B_PAD, n)
    counts = jnp.sum(one_hot, axis=1, keepdims=True)
    pool = one_hot * pl.reciprocal(jnp.maximum(counts, 1.0), approx=True)
    pooled = jnp.dot(pool.astype(bf16), z.astype(bf16),
                     preferred_element_type=f32)                       # (B_PAD, HU)
    pu = pooled + u_sh                                                 # [pool(z) | u]
    fused = jnp.maximum(
        jnp.dot(pu.astype(bf16), wn12, preferred_element_type=f32) + bn, 0.0)

    # ---- head: full (8,128) sublane/lane-dense store; logits live in [:B, :C] ----
    out_ref[...] = jnp.dot(fused.astype(bf16), wh,
                           preferred_element_type=f32) + bh


# ------------------------------ wrappers ----------------------------------
@jax.jit
def gnn_forward_batched(xs, edge_index, u, edge_weight, batch, p_slab):
    """G independent graph-batch instances in one pallas_call.

    xs:(G,N,F) edge_index:(G,2,E) u:(G,B,U) edge_weight:(G,E) batch:(G,N)
    Returns (G, B, C) float32 logits.
    """
    g, n, f = xs.shape
    e = edge_index.shape[2]
    b = u.shape[1]
    assert f == F and u.shape[2] == U and b <= B_PAD and edge_index.shape[1] == 2
    wm = max(n, e)
    wmc = max(wm, HU)     # df lane width (also fixes the old max(N,E) < U pitfall)

    # int32 metadata (row layout): row0 = dst node ids, row1 = batch ids
    meta = jnp.zeros((g, 2, wm), jnp.int32)
    meta = meta.at[:, 0, :e].set(edge_index[:, 1, :].astype(jnp.int32))
    meta = meta.at[:, 1, :n].set(batch.astype(jnp.int32))
    # src node ids in column layout (enables the transposed one-hot build)
    src_col = jnp.zeros((g, wm, 1), jnp.int32)
    src_col = src_col.at[:, :e, 0].set(edge_index[:, 0, :].astype(jnp.int32))
    # float slab: row 0 = edge_weight; rows [R_U, R_U+b) hold u at lane offset H
    df = jnp.zeros((g, DF_ROWS, wmc), jnp.float32)
    df = df.at[:, 0, :e].set(edge_weight.astype(jnp.float32))
    df = df.at[:, R_U:R_U + b, H:HU].set(u.astype(jnp.float32))
    xb = xs.astype(jnp.bfloat16)          # MXU operand in bf16 (f32 accumulate)

    flops = 2 * g * (n * f * HU + wm * n * HU + n * wm * HU
                     + B_PAD * n * HU + B_PAD * HU * H + B_PAD * H * OUT_LANES)
    bytes_accessed = (2 * xb.size + 4 * meta.size + 4 * src_col.size
                      + 4 * df.size + 2 * p_slab.size + 4 * g * B_PAD * OUT_LANES)

    # TODO(synk): if per-step compute is still shorter than DMA issue latency at
    # scale, pack >=8 instances per grid step (block-diagonal pooling) and/or add
    # pipeline_mode=pl.Buffered(3) on the per-step input specs.
    out = pl.pallas_call(
        gnn_kernel,
        out_shape=jax.ShapeDtypeStruct((g * B_PAD, OUT_LANES), jnp.float32),
        grid=(g,),
        in_specs=[
            pl.BlockSpec((None, n, f), lambda i: (i, 0, 0)),
            pl.BlockSpec((None, 2, wm), lambda i: (i, 0, 0)),
            pl.BlockSpec((None, wm, 1), lambda i: (i, 0, 0)),
            pl.BlockSpec((None, DF_ROWS, wmc), lambda i: (i, 0, 0)),
            # parameter slab: same block every step -> DMA'd once, grid-resident
            pl.BlockSpec((P_ROWS, P_COLS), lambda i: (0, 0)),
        ],
        out_specs=pl.BlockSpec((B_PAD, OUT_LANES), lambda i: (i, 0)),
        compiler_params=pltpu.CompilerParams(
            dimension_semantics=("parallel",)),   # v7x: grid split across 2 TCs
        cost_estimate=pl.CostEstimate(flops=flops, transcendentals=0,
                                      bytes_accessed=bytes_accessed),
    )(xb, meta, src_col, df, p_slab)
    return out.reshape(g, B_PAD, OUT_LANES)[:, :b, :C]


def gnn_forward(x, edge_index, u, edge_weight, batch, p_slab):
    """Single graph-batch: matches GNN.forward(x, edge_index, u, edge_weight, ..., batch)."""
    # TODO(synk): edge_attr / batch_size args of the PyTorch forward are unused
    # by this canonical GCN-backbone instantiation.
    if edge_weight is None:
        edge_weight = jnp.ones((edge_index.shape[1],), jnp.float32)
    if batch is None:
        batch = jnp.zeros((x.shape[0],), jnp.int32)
    return gnn_forward_batched(x[None], edge_index[None], u[None],
                               edge_weight[None], batch[None], p_slab)[0]


# ------------------------------ params ------------------------------------
def pack_params(wb, bb, wn1, wn2, bn, wh, bh):
    """Pack all weights + biases into one lane-dense (P_ROWS, 128) bf16 slab."""
    p = jnp.zeros((P_ROWS, P_COLS), jnp.float32)
    p = p.at[R_WB:R_WB + F, 0:H].set(wb)
    p = p.at[R_WN1:R_WN1 + H, 0:H].set(wn1)
    p = p.at[R_WN2:R_WN2 + U, 0:H].set(wn2)
    p = p.at[R_WH:R_WH + H, 0:C].set(wh)
    p = p.at[R_BB, 0:H].set(bb)
    p = p.at[R_BN, 0:H].set(bn)
    p = p.at[R_BH, 0:C].set(bh)
    return p.astype(jnp.bfloat16)


def init_params(key):
    ks = jax.random.split(key, 7)
    wb = jax.random.normal(ks[0], (F, H), jnp.float32) * 0.1    # backbone weight
    bb = jax.random.normal(ks[1], (H,), jnp.float32) * 0.01     # backbone bias
    wn1 = jax.random.normal(ks[2], (H, H), jnp.float32) * 0.1   # neck (pooled path)
    wn2 = jax.random.normal(ks[3], (U, H), jnp.float32) * 0.1   # neck (u path)
    bn = jax.random.normal(ks[4], (H,), jnp.float32) * 0.01     # neck bias
    wh = jax.random.normal(ks[5], (H, C), jnp.float32) * 0.1    # head weight
    bh = jax.random.normal(ks[6], (C,), jnp.float32) * 0.01     # head bias
    return pack_params(wb, bb, wn1, wn2, bn, wh, bh)


if __name__ == "__main__":
    key = jax.random.PRNGKey(0)
    k_x, k_u, k_e, k_w, k_p = jax.random.split(key, 5)
    G = 8   # independent graph-batch instances processed by ONE pallas_call

    xs = jax.random.normal(k_x, (G, N, F), jnp.float32)
    us = jax.random.normal(k_u, (G, B, U), jnp.float32)
    eis = jax.random.randint(k_e, (G, 2, E), 0, N, dtype=jnp.int32)
    ews = jax.random.uniform(k_w, (G, E), jnp.float32)
    batch1 = jnp.concatenate([jnp.zeros(N // 2, jnp.int32),
                              jnp.ones(N - N // 2, jnp.int32)])
    batches = jnp.broadcast_to(batch1, (G, N))

    p_slab = init_params(k_p)

    out_b = gnn_forward_batched(xs, eis, us, ews, batches, p_slab)   # (G, B, C)
    out_1 = gnn_forward(xs[0], eis[0], us[0], ews[0], batches[0], p_slab)
    jax.block_until_ready((out_b, out_1))

    assert out_b.shape == (G, B, C) and out_b.dtype == jnp.float32
    assert out_1.shape == (B, C)
    assert bool(jnp.allclose(out_b[0], out_1, rtol=1e-3, atol=1e-3))
    print("KERNEL_OK")
</pallas_src>

<mosaic_0001>
module attributes {stable_mosaic.version = 11 : i64} {
  func.func @gnn_kernel(%arg0: i32, %arg1: memref<1x16x32xbf16, #tpu.memory_space<vmem>>, %arg2: memref<1x2x32xi32, #tpu.memory_space<vmem>>, %arg3: memref<1x32x1xi32, #tpu.memory_space<vmem>>, %arg4: memref<1x16x40xf32, #tpu.memory_space<vmem>>, %arg5: memref<128x128xbf16, #tpu.memory_space<vmem>>, %arg6: memref<8x128xf32, #tpu.memory_space<vmem>>) attributes {dimension_semantics = [#tpu.dimension_semantics<parallel>], iteration_bounds = array<i64: 8>, scalar_prefetch = 0 : i64, scratch_operands = 0 : i64, tpu.core_type = #tpu.core_type<tc>, window_params = [{transform_indices = @transform_0, window_bounds = array<i64: 1, 16, 32>}, {transform_indices = @transform_1, window_bounds = array<i64: 1, 2, 32>}, {transform_indices = @transform_2, window_bounds = array<i64: 1, 32, 1>}, {transform_indices = @transform_3, window_bounds = array<i64: 1, 16, 40>}, {pipeline_mode = #tpu.pipeline_mode<synchronous>, transform_indices = @transform_4, window_bounds = array<i64: 128, 128>}, {transform_indices = @transform_5, window_bounds = array<i64: 8, 128>}]} {
    %c0 = arith.constant 0 : index
    %c0_0 = arith.constant 0 : index
    %0 = vector.load %arg5[%c0, %c0_0] : memref<128x128xbf16, #tpu.memory_space<vmem>>, vector<32x40xbf16>
    %c32 = arith.constant 32 : index
    %c0_1 = arith.constant 0 : index
    %1 = vector.load %arg5[%c32, %c0_1] : memref<128x128xbf16, #tpu.memory_space<vmem>>, vector<40x32xbf16>
    %c72 = arith.constant 72 : index
    %c0_2 = arith.constant 0 : index
    %2 = vector.load %arg5[%c72, %c0_2] : memref<128x128xbf16, #tpu.memory_space<vmem>>, vector<32x128xbf16>
    %c104 = arith.constant 104 : index
    %c0_3 = arith.constant 0 : index
    %3 = vector.load %arg5[%c104, %c0_3] : memref<128x128xbf16, #tpu.memory_space<vmem>>, vector<1x40xbf16>
    %4 = arith.extf %3 : vector<1x40xbf16> to vector<1x40xf32>
    %c112 = arith.constant 112 : index
    %c0_4 = arith.constant 0 : index
    %5 = vector.load %arg5[%c112, %c0_4] : memref<128x128xbf16, #tpu.memory_space<vmem>>, vector<1x32xbf16>
    %6 = arith.extf %5 : vector<1x32xbf16> to vector<1x32xf32>
    %c120 = arith.constant 120 : index
    %c0_5 = arith.constant 0 : index
    %7 = vector.load %arg5[%c120, %c0_5] : memref<128x128xbf16, #tpu.memory_space<vmem>>, vector<1x128xbf16>
    %8 = arith.extf %7 : vector<1x128xbf16> to vector<1x128xf32>
    %c0_6 = arith.constant 0 : index
    %c0_7 = arith.constant 0 : index
    %c0_8 = arith.constant 0 : index
    %9 = vector.load %arg2[%c0_6, %c0_7, %c0_8] : memref<1x2x32xi32, #tpu.memory_space<vmem>>, vector<1x1x32xi32>
    %10 = vector.shape_cast %9 : vector<1x1x32xi32> to vector<1x32xi32>
    %c0_9 = arith.constant 0 : index
    %c1 = arith.constant 1 : index
    %c0_10 = arith.constant 0 : index
    %11 = vector.load %arg2[%c0_9, %c1, %c0_10] : memref<1x2x32xi32, #tpu.memory_space<vmem>>, vector<1x1x16xi32>
    %12 = vector.shape_cast %11 : vector<1x1x16xi32> to vector<1x16xi32>
    %c0_11 = arith.constant 0 : index
    %c0_12 = arith.constant 0 : index
    %c0_13 = arith.constant 0 : index
    %13 = vector.load %arg3[%c0_11, %c0_12, %c0_13] : memref<1x32x1xi32, #tpu.memory_space<vmem>>, vector<1x32x1xi32>
    %14 = vector.shape_cast %13 : vector<1x32x1xi32> to vector<32x1xi32>
    %c0_14 = arith.constant 0 : index
    %c0_15 = arith.constant 0 : index
    %c0_16 = arith.constant 0 : index
    %15 = vector.load %arg4[%c0_14, %c0_15, %c0_16] : memref<1x16x40xf32, #tpu.memory_space<vmem>>, vector<1x1x32xf32>
    %16 = vector.shape_cast %15 : vector<1x1x32xf32> to vector<1x32xf32>
    %c0_17 = arith.constant 0 : index
    %c8 = arith.constant 8 : index
    %c0_18 = arith.constant 0 : index
    %17 = vector.load %arg4[%c0_17, %c8, %c0_18] : memref<1x16x40xf32, #tpu.memory_space<vmem>>, vector<1x8x40xf32>
    %18 = vector.shape_cast %17 : vector<1x8x40xf32> to vector<8x40xf32>
    %c0_19 = arith.constant 0 : index
    %c0_20 = arith.constant 0 : index
    %c0_21 = arith.constant 0 : index
    %19 = vector.load %arg1[%c0_19, %c0_20, %c0_21] : memref<1x16x32xbf16, #tpu.memory_space<vmem>>, vector<1x16x32xbf16>
    %20 = vector.shape_cast %19 : vector<1x16x32xbf16> to vector<16x32xbf16>
    %cst = arith.constant dense<0.000000e+00> : vector<16x40xf32>
    %21 = tpu.matmul %20, %0, %cst {dimension_numbers = #tpu.dot_dimension_numbers<[1], [0], [0], [1], [0, 0, 1, 1], [], []>} : vector<16x32xbf16>, vector<32x40xbf16>, vector<16x40xf32> -> vector<16x40xf32>
    %22 = tpu.iota {dimensions = array<i32: 1>} : vector<32x16xi32>
    %23 = vector.broadcast %14 : vector<32x1xi32> to vector<32x16xi32>
    %24 = arith.cmpi eq, %22, %23 : vector<32x16xi32>
    %25 = arith.extui %24 : vector<32x16xi1> to vector<32x16xi32>
    %26 = arith.sitofp %25 : vector<32x16xi32> to vector<32x16xf32>
    %27 = arith.truncf %26 : vector<32x16xf32> to vector<32x16xbf16>
    %28 = arith.truncf %21 : vector<16x40xf32> to vector<16x40xbf16>
    %cst_22 = arith.constant dense<0.000000e+00> : vector<32x40xf32>
    %29 = tpu.matmul %27, %28, %cst_22 {dimension_numbers = #tpu.dot_dimension_numbers<[1], [0], [0], [1], [0, 0, 1, 1], [], []>} : vector<32x16xbf16>, vector<16x40xbf16>, vector<32x40xf32> -> vector<32x40xf32>
    %30 = tpu.iota {dimensions = array<i32: 0>} : vector<16x32xi32>
    %31 = vector.broadcast %10 : vector<1x32xi32> to vector<16x32xi32>
    %32 = arith.cmpi eq, %30, %31 : vector<16x32xi32>
    %33 = arith.extui %32 : vector<16x32xi1> to vector<16x32xi32>
    %34 = arith.sitofp %33 : vector<16x32xi32> to vector<16x32xf32>
    %35 = vector.broadcast %16 : vector<1x32xf32> to vector<16x32xf32>
    %36 = arith.mulf %34, %35 : vector<16x32xf32>
    %37 = arith.truncf %36 : vector<16x32xf32> to vector<16x32xbf16>
    %38 = arith.truncf %29 : vector<32x40xf32> to vector<32x40xbf16>
    %cst_23 = arith.constant dense<0.000000e+00> : vector<16x40xf32>
    %39 = tpu.matmul %37, %38, %cst_23 {dimension_numbers = #tpu.dot_dimension_numbers<[1], [0], [0], [1], [0, 0, 1, 1], [], []>} : vector<16x32xbf16>, vector<32x40xbf16>, vector<16x40xf32> -> vector<16x40xf32>
    %40 = arith.addf %39, %21 : vector<16x40xf32>
    %cst_24 = arith.constant dense<0.000000e+00> : vector<16xf32>
    %41 = vector.multi_reduction <add>, %36, %cst_24 [1] : vector<16x32xf32> to vector<16xf32>
    %42 = vector.shape_cast %41 : vector<16xf32> to vector<16x1xf32>
    %cst_25 = arith.constant 1.000000e+00 : f32
    %43 = vector.broadcast %cst_25 : f32 to vector<16x1xf32>
    %44 = arith.addf %42, %43 : vector<16x1xf32>
    %cst_26 = arith.constant 9.99999996E-13 : f32
    %45 = vector.broadcast %cst_26 : f32 to vector<16x1xf32>
    %46 = arith.maximumf %44, %45 : vector<16x1xf32>
    %47 = tpu.reciprocal %46 {approx = true} : vector<16x1xf32> -> vector<16x1xf32>
    %48 = vector.broadcast %47 : vector<16x1xf32> to vector<16x40xf32>
    %49 = arith.mulf %40, %48 : vector<16x40xf32>
    %50 = vector.broadcast %4 : vector<1x40xf32> to vector<16x40xf32>
    %51 = arith.addf %49, %50 : vector<16x40xf32>
    %cst_27 = arith.constant 0.000000e+00 : f32
    %52 = vector.broadcast %cst_27 : f32 to vector<16x40xf32>
    %53 = arith.maximumf %51, %52 : vector<16x40xf32>
    %54 = tpu.iota {dimensions = array<i32: 0>} : vector<8x16xi32>
    %55 = vector.broadcast %12 : vector<1x16xi32> to vector<8x16xi32>
    %56 = arith.cmpi eq, %54, %55 : vector<8x16xi32>
    %57 = arith.extui %56 : vector<8x16xi1> to vector<8x16xi32>
    %58 = arith.sitofp %57 : vector<8x16xi32> to vector<8x16xf32>
    %cst_28 = arith.constant dense<0.000000e+00> : vector<8xf32>
    %59 = vector.multi_reduction <add>, %58, %cst_28 [1] : vector<8x16xf32> to vector<8xf32>
    %60 = vector.shape_cast %59 : vector<8xf32> to vector<8x1xf32>
    %cst_29 = arith.constant 1.000000e+00 : f32
    %61 = vector.broadcast %cst_29 : f32 to vector<8x1xf32>
    %62 = arith.maximumf %60, %61 : vector<8x1xf32>
    %63 = tpu.reciprocal %62 {approx = true} : vector<8x1xf32> -> vector<8x1xf32>
    %64 = vector.broadcast %63 : vector<8x1xf32> to vector<8x16xf32>
    %65 = arith.mulf %58, %64 : vector<8x16xf32>
    %66 = arith.truncf %65 : vector<8x16xf32> to vector<8x16xbf16>
    %67 = arith.truncf %53 : vector<16x40xf32> to vector<16x40xbf16>
    %cst_30 = arith.constant dense<0.000000e+00> : vector<8x40xf32>
    %68 = tpu.matmul %66, %67, %cst_30 {dimension_numbers = #tpu.dot_dimension_numbers<[1], [0], [0], [1], [0, 0, 1, 1], [], []>} : vector<8x16xbf16>, vector<16x40xbf16>, vector<8x40xf32> -> vector<8x40xf32>
    %69 = arith.addf %68, %18 : vector<8x40xf32>
    %70 = arith.truncf %69 : vector<8x40xf32> to vector<8x40xbf16>
    %cst_31 = arith.constant dense<0.000000e+00> : vector<8x32xf32>
    %71 = tpu.matmul %70, %1, %cst_31 {dimension_numbers = #tpu.dot_dimension_numbers<[1], [0], [0], [1], [0, 0, 1, 1], [], []>} : vector<8x40xbf16>, vector<40x32xbf16>, vector<8x32xf32> -> vector<8x32xf32>
    %72 = vector.broadcast %6 : vector<1x32xf32> to vector<8x32xf32>
    %73 = arith.addf %71, %72 : vector<8x32xf32>
    %cst_32 = arith.constant 0.000000e+00 : f32
    %74 = vector.broadcast %cst_32 : f32 to vector<8x32xf32>
    %75 = arith.maximumf %73, %74 : vector<8x32xf32>
    %76 = arith.truncf %75 : vector<8x32xf32> to vector<8x32xbf16>
    %cst_33 = arith.constant dense<0.000000e+00> : vector<8x128xf32>
    %77 = tpu.matmul %76, %2, %cst_33 {dimension_numbers = #tpu.dot_dimension_numbers<[1], [0], [0], [1], [0, 0, 1, 1], [], []>} : vector<8x32xbf16>, vector<32x128xbf16>, vector<8x128xf32> -> vector<8x128xf32>
    %78 = vector.broadcast %8 : vector<1x128xf32> to vector<8x128xf32>
    %79 = arith.addf %77, %78 : vector<8x128xf32>
    %c0_34 = arith.constant 0 : index
    %c0_35 = arith.constant 0 : index
    %80 = vector.load %arg6[%c0_34, %c0_35] : memref<8x128xf32, #tpu.memory_space<vmem>>, vector<8x128xf32>
    tpu.vector_store %arg6[%c0_34, %c0_35], %79 {strides = array<i32>} : memref<8x128xf32, #tpu.memory_space<vmem>>, vector<8x128xf32>,
    return
  }
  func.func @transform_0(%arg0: i32) -> (i32, i32, i32) {
    %c0_i32 = arith.constant 0 : i32
    %c0_i32_0 = arith.constant 0 : i32
    %c0_i32_1 = arith.constant 0 : i32
    return %arg0, %c0_i32, %c0_i32_0 : i32, i32, i32
  }
  func.func @transform_1(%arg0: i32) -> (i32, i32, i32) {
    %c0_i32 = arith.constant 0 : i32
    %c0_i32_0 = arith.constant 0 : i32
    %c0_i32_1 = arith.constant 0 : i32
    return %arg0, %c0_i32, %c0_i32_0 : i32, i32, i32
  }
  func.func @transform_2(%arg0: i32) -> (i32, i32, i32) {
    %c0_i32 = arith.constant 0 : i32
    %c0_i32_0 = arith.constant 0 : i32
    %c0_i32_1 = arith.constant 0 : i32
    return %arg0, %c0_i32, %c0_i32_0 : i32, i32, i32
  }
  func.func @transform_3(%arg0: i32) -> (i32, i32, i32) {
    %c0_i32 = arith.constant 0 : i32
    %c0_i32_0 = arith.constant 0 : i32
    %c0_i32_1 = arith.constant 0 : i32
    return %arg0, %c0_i32, %c0_i32_0 : i32, i32, i32
  }
  func.func @transform_4(%arg0: i32) -> (i32, i32) {
    %c0_i32 = arith.constant 0 : i32
    %c0_i32_0 = arith.constant 0 : i32
    %c0_i32_1 = arith.constant 0 : i32
    return %c0_i32, %c0_i32_0 : i32, i32
  }
  func.func @transform_5(%arg0: i32) -> (i32, i32) {
    %c0_i32 = arith.constant 0 : i32
    %c0_i32_0 = arith.constant 0 : i32
    return %arg0, %c0_i32 : i32, i32
  }
}

</mosaic_0001>

<llo_original>
// kernel: gnn_forward_batched.1
$region0: #{gnn_forward_batched.1}
  #allocation0 [shape = 'u32[]', space=smem, size = 0x4, offset = 0x4, fixed_abs, tag = 'smem constant byte address 0x4 - core index']
  #allocation1 [shape = 'u32[72,128]{1,0:T(1,128)}', space=vmem, size = 0x9000, scoped, tag = 'internal scratch']
  %s0 = inlined_call_operand.vmem [shape: bf16[8,16,32], index: 0, kind: input, shape index: {}]
  %s1 = inlined_call_operand.vmem [shape: s32[8,2,32], index: 1, kind: input, shape index: {}]
  %s2 = inlined_call_operand.vmem [shape: s32[8,32,1], index: 2, kind: input, shape index: {}]
  %s3 = inlined_call_operand.vmem [shape: f32[8,16,40], index: 3, kind: input, shape index: {}]
  %s4 = inlined_call_operand.vmem [shape: bf16[128,128], index: 4, kind: input, shape index: {}]
  %s5 = inlined_call_operand.vmem [shape: f32[64,128], index: 5, kind: output, shape index: {}]
  %s6 = sld [smem:[#allocation0]]
  $region53: #{gnn_forward_batched.1} parent=0
    _
  %s8 = ssub.s32 1, %s6
  %s9 = scalar_select 0, %s8, %s6
  loop: start=0, step=1, limit=10
  $region2: #{gnn_forward_batched.1} parent=0 // loop_pre_header
    _
  $region3: #{gnn_forward_batched.1} parent=0 // loop_header
    %s11 = sphi 0, %s15
    %p12 = scmp.ge.s32.totalorder %s11, 10
    %s21 = sphi 0, %s23
    %s24 = sphi 0, %s21
    %s25 = sphi 0, %s24
    %s41 = sphi 0, %s25
    %s47 = sphi 0, %s49
    %s50 = sphi 0, %s47
    %s51 = sphi 0, %s50
    %s67 = sphi 0, %s51
    %s73 = sphi 0, %s75
    %s76 = sphi 0, %s73
    %s77 = sphi 0, %s76
    %s93 = sphi 0, %s77
    %s99 = sphi 0, %s101
    %s102 = sphi 0, %s99
    %s103 = sphi 0, %s102
    %s119 = sphi 0, %s103
    %s123 = sphi 0, %s123
    %s125 = sphi 0, %s123
    %s126 = sphi 0, %s125
    %s140 = sphi 0, %s126
    %s146 = sphi 0, %s148
    %s149 = sphi 0, %s146
    %s150 = sphi 0, %s149
    %s166 = sphi 0, %s150
  $region4: #{gnn_forward_batched.1} parent=0 // loop_header_branch
    %14 = sbr.rel (%p12) target = $region8
  $region5: #{gnn_forward_batched.1} parent=0 // loop_body
    %s16 = ssub.s32 %s11, 1
    %s17 = ssub.s32 %s11, 2
    %s18 = sadd.s32 %s11, 1
    %s19 = ssub.s32 %s11, %s18
    %p20 = scmp.eq.s32.totalorder %s19, 0
    %s22 = sadd.s32 %s21, 1
    %s23 = scalar_select %p20, %s21, %s22
    %p26 = pneg %p20
    %p27 = scmp.eq.s32.totalorder %s11, 7
    %p28 = por %p26, %p27
    %p29 = scmp.ne.s32.totalorder %s21, %s24
    %p30 = scmp.eq.s32.totalorder %s11, 0
    %p31 = por %p29, %p30
    %p32 = scmp.ne.s32.totalorder %s21, %s24
    %p33 = scmp.eq.s32.totalorder %s16, 7
    %p34 = por %p32, %p33
    %p35 = scmp.ne.s32.totalorder %s24, %s25
    %p36 = scmp.eq.s32.totalorder %s16, 0
    %p37 = por %p35, %p36
    %p38 = scmp.ne.s32.totalorder %s24, %s25
    %p39 = scmp.eq.s32.totalorder %s17, 7
    %p40 = por %p38, %p39
    %p42 = scmp.ne.s32.totalorder %s25, %s41
    %p43 = scmp.eq.s32.totalorder %s17, 0
    %p44 = por %p42, %p43
    %s45 = ssub.s32 %s11, %s18
    %p46 = scmp.eq.s32.totalorder %s45, 0
    %s48 = sadd.s32 %s47, 1
    %s49 = scalar_select %p46, %s47, %s48
    %p52 = pneg %p46
    %p53 = scmp.eq.s32.totalorder %s11, 7
    %p54 = por %p52, %p53
    %p55 = scmp.ne.s32.totalorder %s47, %s50
    %p56 = scmp.eq.s32.totalorder %s11, 0
    %p57 = por %p55, %p56
    %p58 = scmp.ne.s32.totalorder %s47, %s50
    %p59 = scmp.eq.s32.totalorder %s16, 7
    %p60 = por %p58, %p59
    %p61 = scmp.ne.s32.totalorder %s50, %s51
    %p62 = scmp.eq.s32.totalorder %s16, 0
    %p63 = por %p61, %p62
    %p64 = scmp.ne.s32.totalorder %s50, %s51
    %p65 = scmp.eq.s32.totalorder %s17, 7
    %p66 = por %p64, %p65
    %p68 = scmp.ne.s32.totalorder %s51, %s67
    %p69 = scmp.eq.s32.totalorder %s17, 0
    %p70 = por %p68, %p69
    %s71 = ssub.s32 %s11, %s18
    %p72 = scmp.eq.s32.totalorder %s71, 0
    %s74 = sadd.s32 %s73, 1
    %s75 = scalar_select %p72, %s73, %s74
    %p78 = pneg %p72
    %p79 = scmp.eq.s32.totalorder %s11, 7
    %p80 = por %p78, %p79
    %p81 = scmp.ne.s32.totalorder %s73, %s76
    %p82 = scmp.eq.s32.totalorder %s11, 0
    %p83 = por %p81, %p82
    %p84 = scmp.ne.s32.totalorder %s73, %s76
    %p85 = scmp.eq.s32.totalorder %s16, 7
    %p86 = por %p84, %p85
    %p87 = scmp.ne.s32.totalorder %s76, %s77
    %p88 = scmp.eq.s32.totalorder %s16, 0
    %p89 = por %p87, %p88
    %p90 = scmp.ne.s32.totalorder %s76, %s77
    %p91 = scmp.eq.s32.totalorder %s17, 7
    %p92 = por %p90, %p91
    %p94 = scmp.ne.s32.totalorder %s77, %s93
    %p95 = scmp.eq.s32.totalorder %s17, 0
    %p96 = por %p94, %p95
    %s97 = ssub.s32 %s11, %s18
    %p98 = scmp.eq.s32.totalorder %s97, 0
    %s100 = sadd.s32 %s99, 1
    %s101 = scalar_select %p98, %s99, %s100
    %p104 = pneg %p98
    %p105 = scmp.eq.s32.totalorder %s11, 7
    %p106 = por %p104, %p105
    %p107 = scmp.ne.s32.totalorder %s99, %s102
    %p108 = scmp.eq.s32.totalorder %s11, 0
    %p109 = por %p107, %p108
    %p110 = scmp.ne.s32.totalorder %s99, %s102
    %p111 = scmp.eq.s32.totalorder %s16, 7
    %p112 = por %p110, %p111
    %p113 = scmp.ne.s32.totalorder %s102, %s103
    %p114 = scmp.eq.s32.totalorder %s16, 0
    %p115 = por %p113, %p114
    %p116 = scmp.ne.s32.totalorder %s102, %s103
    %p117 = scmp.eq.s32.totalorder %s17, 7
    %p118 = por %p116, %p117
    %p120 = scmp.ne.s32.totalorder %s103, %s119
    %p121 = scmp.eq.s32.totalorder %s17, 0
    %p122 = por %p120, %p121
    %s124 = sadd.s32 %s123, 1
    %p127 = scmp.eq.s32.totalorder %s11, 7
    %p128 = scmp.ne.s32.totalorder %s123, %s125
    %p129 = scmp.eq.s32.totalorder %s11, 0
    %p130 = por %p128, %p129
    %p131 = scmp.ne.s32.totalorder %s123, %s125
    %p132 = scmp.eq.s32.totalorder %s16, 7
    %p133 = por %p131, %p132
    %p134 = scmp.ne.s32.totalorder %s125, %s126
    %p135 = scmp.eq.s32.totalorder %s16, 0
    %p136 = por %p134, %p135
    %p137 = scmp.ne.s32.totalorder %s125, %s126
    %p138 = scmp.eq.s32.totalorder %s17, 7
    %p139 = por %p137, %p138
    %p141 = scmp.ne.s32.totalorder %s126, %s140
    %p142 = scmp.eq.s32.totalorder %s17, 0
    %p143 = por %p141, %p142
    %s144 = ssub.s32 %s11, %s18
    %p145 = scmp.eq.s32.totalorder %s144, 0
    %s147 = sadd.s32 %s146, 1
    %s148 = scalar_select %p145, %s146, %s147
    %p151 = pneg %p145
    %p152 = scmp.eq.s32.totalorder %s11, 7
    %p153 = por %p151, %p152
    %p154 = scmp.ne.s32.totalorder %s146, %s149
    %p155 = scmp.eq.s32.totalorder %s11, 0
    %p156 = por %p154, %p155
    %p157 = scmp.ne.s32.totalorder %s146, %s149
    %p158 = scmp.eq.s32.totalorder %s16, 7
    %p159 = por %p157, %p158
    %p160 = scmp.ne.s32.totalorder %s149, %s150
    %p161 = scmp.eq.s32.totalorder %s16, 0
    %p162 = por %p160, %p161
    %p163 = scmp.ne.s32.totalorder %s149, %s150
    %p164 = scmp.eq.s32.totalorder %s17, 7
    %p165 = por %p163, %p164
    %p167 = scmp.ne.s32.totalorder %s150, %s166
    %p168 = scmp.eq.s32.totalorder %s17, 0
    %p169 = por %p167, %p168
    %p170 = scmp.le.s32.totalorder 1, %s11
    %p171 = scmp.lt.s32.totalorder %s11, 9
    %p172 = pnand %p170, %p171
    %p173 = pneg %p172
    // Predicated region
    $region9: #{gnn_forward_batched.1} parent=5 // pred_check
      _
    $region10: #{gnn_forward_batched.1} parent=5 // pred_check_branch
      %175 = sbr.rel (%p172) target = $region12
    $region11: #{gnn_forward_batched.1} parent=5 // pred_region
      %s176 = ssub.s32 %s11, 1
      // Predicated region
      $region13: #{gnn_forward_batched.1} parent=11 // pred_check
        %p177 = pneg %p136
      $region14: #{gnn_forward_batched.1} parent=11 // pred_check_branch
        %179 = sbr.rel (%p177) target = $region16
      $region15: #{gnn_forward_batched.1} parent=11 // pred_region
        _
      $region16: #{gnn_forward_batched.1} parent=11 // pred_fallthru
        _
    $region12: #{gnn_forward_batched.1} parent=5 // pred_fallthru
      _
    %p180 = scmp.lt.s32.totalorder %s11, 8
    // Predicated region
    $region17: #{gnn_forward_batched.1} parent=5 // pred_check
      %p181 = pneg %p180
    $region18: #{gnn_forward_batched.1} parent=5 // pred_check_branch
      %183 = sbr.rel (%p181) target = $region20
    $region19: #{gnn_forward_batched.1} parent=5 // pred_region
      // Predicated region
      $region21: #{gnn_forward_batched.1} parent=19 // pred_check
        %p184 = pneg %p31
      $region22: #{gnn_forward_batched.1} parent=19 // pred_check_branch
        %186 = sbr.rel (%p184) target = $region24
      $region23: #{gnn_forward_batched.1} parent=19 // pred_region
        %p187 = scmp.lt.s32.totalorder %s11, 7
        %s188 = scalar_select %p187, %s11, 7
        %s189 = smul.addr %s188, 2
        %s190 = smul.addr %s189, 4
        %s191 = scalar_lea.vmem %s0, %s190
      $region24: #{gnn_forward_batched.1} parent=19 // pred_fallthru
        _
      // Predicated region
      $region25: #{gnn_forward_batched.1} parent=19 // pred_check
        %p192 = pneg %p57
      $region26: #{gnn_forward_batched.1} parent=19 // pred_check_branch
        %194 = sbr.rel (%p192) target = $region28
      $region27: #{gnn_forward_batched.1} parent=19 // pred_region
        %p195 = scmp.lt.s32.totalorder %s11, 7
        %s196 = scalar_select %p195, %s11, 7
        %s197 = smul.addr %s196, 2
        %s198 = scalar_lea.vmem %s1, %s197
      $region28: #{gnn_forward_batched.1} parent=19 // pred_fallthru
        _
      // Predicated region
      $region29: #{gnn_forward_batched.1} parent=19 // pred_check
        %p199 = pneg %p83
      $region30: #{gnn_forward_batched.1} parent=19 // pred_check_branch
        %201 = sbr.rel (%p199) target = $region32
      $region31: #{gnn_forward_batched.1} parent=19 // pred_region
        %p202 = scmp.lt.s32.totalorder %s11, 7
        %s203 = scalar_select %p202, %s11, 7
        %s204 = smul.addr %s203, 4
        %s205 = smul.addr %s204, 8
        %s206 = scalar_lea.vmem %s2, %s205
      $region32: #{gnn_forward_batched.1} parent=19 // pred_fallthru
        _
      // Predicated region
      $region33: #{gnn_forward_batched.1} parent=19 // pred_check
        %p207 = pneg %p109
      $region34: #{gnn_forward_batched.1} parent=19 // pred_check_branch
        %209 = sbr.rel (%p207) target = $region36
      $region35: #{gnn_forward_batched.1} parent=19 // pred_region
        %p210 = scmp.lt.s32.totalorder %s11, 7
        %s211 = scalar_select %p210, %s11, 7
        %s212 = smul.addr %s211, 2
        %s213 = smul.addr %s212, 8
        %s214 = scalar_lea.vmem %s3, %s213
      $region36: #{gnn_forward_batched.1} parent=19 // pred_fallthru
        _
    $region20: #{gnn_forward_batched.1} parent=5 // pred_fallthru
      _
    %p215 = scmp.le.s32.totalorder 1, %s11
    %p216 = scmp.lt.s32.totalorder %s11, 9
    %p217 = pnand %p215, %p216
    %p218 = pneg %p217
    // Predicated region
    $region37: #{gnn_forward_batched.1} parent=5 // pred_check
      _
    $region38: #{gnn_forward_batched.1} parent=5 // pred_check_branch
      %220 = sbr.rel (%p217) target = $region40
    $region39: #{gnn_forward_batched.1} parent=5 // pred_region
      %s221 = ssub.s32 %s11, 1
      %p222 = scmp.lt.s32.totalorder %s16, 7
      %s223 = scalar_select %p222, %s16, 7
      %s224 = smul.addr %s223, 2
      %s225 = smul.addr %s224, 4
      %s226 = scalar_lea.vmem %s0, %s225
      %p227 = pneg %p37
      %p228 = pneg %p34
      %p229 = scmp.lt.s32.totalorder %s16, 7
      %s230 = scalar_select %p229, %s16, 7
      %s231 = smul.addr %s230, 2
      %s232 = scalar_lea.vmem %s1, %s231
      %p233 = pneg %p63
      %p234 = pneg %p60
      %p235 = scmp.lt.s32.totalorder %s16, 7
      %s236 = scalar_select %p235, %s16, 7
      %s237 = smul.addr %s236, 4
      %s238 = smul.addr %s237, 8
      %s239 = scalar_lea.vmem %s2, %s238
      %p240 = pneg %p89
      %p241 = pneg %p86
      %p242 = scmp.lt.s32.totalorder %s16, 7
      %s243 = scalar_select %p242, %s16, 7
      %s244 = smul.addr %s243, 2
      %s245 = smul.addr %s244, 8
      %s246 = scalar_lea.vmem %s3, %s245
      %p247 = pneg %p115
      %p248 = pneg %p112
      %p249 = pneg %p136
      %p250 = pneg %p133
      %p251 = pneg %p162
      %p252 = pneg %p159
      %p253 = scmp.lt.s32.totalorder %s16, 7
      %s254 = scalar_select %p253, %s16, 7
      %s255 = smul.addr %s254, 8
      %s256 = scalar_lea.vmem %s5, %s255
      %p257 = scmp.lt.s32.totalorder %s16, 7
      %s258 = scalar_select %p257, %s16, 7
      %s259 = smul.addr %s258, 2
      %s260 = smul.addr %s259, 4
      %s261 = scalar_lea.vmem %s0, %s260
      %p262 = scmp.lt.s32.totalorder %s16, 7
      %s263 = scalar_select %p262, %s16, 7
      %s264 = smul.addr %s263, 2
      %s265 = scalar_lea.vmem %s1, %s264
      %p266 = scmp.lt.s32.totalorder %s16, 7
      %s267 = scalar_select %p266, %s16, 7
      %s268 = smul.addr %s267, 4
      %s269 = smul.addr %s268, 8
      %s270 = scalar_lea.vmem %s2, %s269
      %p271 = scmp.lt.s32.totalorder %s16, 7
      %s272 = scalar_select %p271, %s16, 7
      %s273 = smul.addr %s272, 2
      %s274 = smul.addr %s273, 8
      %s275 = scalar_lea.vmem %s3, %s274
      %p276 = scmp.lt.s32.totalorder %s16, 7
      %s277 = scalar_select %p276, %s16, 7
      %s278 = smul.addr %s277, 8
      %s279 = scalar_lea.vmem %s5, %s278
      %v281 = vld [vmem:[%s4] sm:$0xf]
      %v282 = vld [vmem:[%s4 + $0x4] sm:$0xf]
      %v283 = vld [vmem:[%s4 + $0x8] sm:$0xf]
      %v284 = vld [vmem:[%s4 + $0xc] sm:$0xf]
      %v285 = vld [vmem:[%s4 + $0x10] sm:$0xf]
      %v286 = vld [vmem:[%s4 + $0x14] sm:$0xf]
      %v287 = vld [vmem:[%s4 + $0x18] sm:$0xf]
      %v288 = vld [vmem:[%s4 + $0x1c] sm:$0xf]
      %v289 = vld [vmem:[%s4 + $0x20] sm:$0xf]
      %v290 = vld [vmem:[%s4 + $0x24] sm:$0xf]
      %v291 = vld [vmem:[%s4 + $0x28] sm:$0xf]
      %v292 = vld [vmem:[%s4 + $0x2c] sm:$0xf]
      %v293 = vld [vmem:[%s4 + $0x30] sm:$0xf]
      %v294 = vld [vmem:[%s4 + $0x34] sm:$0x1]
      %v295 = vunpack.c.l.bf16 %v294
      %v296 = vld [vmem:[%s4 + $0x38] sm:$0x1]
      %v297 = vunpack.c.l.bf16 %v296
      %v298 = vld [vmem:[%s4 + $0x3c] sm:$0x1]
      %v299 = vunpack.c.l.bf16 %v298
      %v300 = vld [vmem:[%s265] sm:$0x1]
      %v301 = vld [vmem:[%s265 + $0x1] sm:$0x1]
      %v302 = vld [vmem:[%s270] sm:$0xff]
      %v303 = vld [vmem:[%s270 + $0x8] sm:$0xff]
      %v304 = vld [vmem:[%s270 + $0x10] sm:$0xff]
      %v305 = vld [vmem:[%s270 + $0x18] sm:$0xff]
      %v306 = vld [vmem:[%s275] sm:$0x1]
      %v307 = vld [vmem:[%s275 + $0x8] sm:$0xff]
      %v308 = vld [vmem:[%s261] sm:$0xf]
      %v309 = vld [vmem:[%s261 + $0x4] sm:$0xf]
      %v312 = vunpack.c.l.b16 %v308
      %v313 = vunpack.c.l.b16 %v309
      %v314 = vpack.c.b16 %v313, %v312
      %v319 = vunpack.c.l.b16 %v281
      %v320 = vunpack.c.l.b16 %v282
      %v321 = vunpack.c.l.b16 %v283
      %v322 = vunpack.c.l.b16 %v284
      %v323 = vpack.c.b16 %v320, %v319
      %v324 = vpack.c.b16 %v322, %v321
      %vm327 = vcmask 261120
      %v329 = vsel %vm327, %v314, 0
      %331 = vmatpush.bf16.msra.mxu0 0
      %332 = vmatpush.bf16.msra.mxu0 0
      %333 = vmatpush.bf16.msra.mxu0 0
      %334 = vmatpush.bf16.msra.mxu0 0
      %335 = vmatpush.bf16.msra.mxu0 0
      %336 = vmatpush.bf16.msra.mxu0 0
      %337 = vmatpush.bf16.msra.mxu0 %v324
      %338 = vmatpush.bf16.msra.mxu0 %v323
      %339 = vmatmul.bf16.gmra.mxu0 %v329
      %v340 = vpop.f32.mrf.mxu0
      %v341 = vadd.f32 0.0, %v340
      %v342 = vpop.f32.mrf.mxu0
      %v343 = vadd.f32 0.0, %v342
      %344 = vdwg.mxu0
      %v345 = vlaneseq
      %v346 = vand.u32 %v345, 127
      %347 = vset.pattern.permute.xlu0 0
      %348 = vperm.xlu0 %347, %v302
      %v349 = vpop.permute.xlu0 %348
      %350 = vset.pattern.permute.xlu0 0
      %351 = vperm.xlu0 %350, %v303
      %v352 = vpop.permute.xlu0 %351
      %353 = vset.pattern.permute.xlu0 0
      %354 = vperm.xlu0 %353, %v304
      %v355 = vpop.permute.xlu0 %354
      %356 = vset.pattern.permute.xlu0 0
      %357 = vperm.xlu0 %356, %v305
      %v358 = vpop.permute.xlu0 %357
      %vm359 = vcmp.eq.s32.totalorder %v346, %v349
      %vm360 = vcmp.eq.s32.totalorder %v346, %v352
      %vm361 = vcmp.eq.s32.totalorder %v346, %v355
      %vm362 = vcmp.eq.s32.totalorder %v346, %v358
      %v363 = vsel %vm359, 1, 0
      %v364 = vsel %vm360, 1, 0
      %v365 = vsel %vm361, 1, 0
      %v366 = vsel %vm362, 1, 0
      %v367 = vcvt.s32.f32 %v363
      %v368 = vcvt.s32.f32 %v364
      %v369 = vcvt.s32.f32 %v365
      %v370 = vcvt.s32.f32 %v366
      %v371 = vpack.c.bf16 %v368, %v367
      %v372 = vpack.c.bf16 %v370, %v369
      %v373 = vpack.c.bf16 %v343, %v341
      %vm374 = vcmask 130048
      %v376 = vsel %vm374, %v371, 0
      %v379 = vsel %vm374, %v372, 0
      %381 = vmatpush.bf16.msra.mxu0 0
      %382 = vmatpush.bf16.msra.mxu0 0
      %383 = vmatpush.bf16.msra.mxu0 0
      %384 = vmatpush.bf16.msra.mxu0 0
      %385 = vmatpush.bf16.msra.mxu0 0
      %386 = vmatpush.bf16.msra.mxu0 0
      %387 = vmatpush.bf16.msra.mxu0 0
      %388 = vmatpush.bf16.msra.mxu0 %v373
      %389 = vmatmul.bf16.gmra.mxu0 %v376
      %v390 = vpop.f32.mrf.mxu0
      %v391 = vadd.f32 0.0, %v390
      %v392 = vpop.f32.mrf.mxu0
      %v393 = vadd.f32 0.0, %v392
      %394 = vmatmul.bf16.gmra.mxu0 %v379
      %v395 = vpop.f32.mrf.mxu0
      %v396 = vadd.f32 0.0, %v395
      %v397 = vpop.f32.mrf.mxu0
      %v398 = vadd.f32 0.0, %v397
      %399 = vdwg.mxu0
      %v400 = vlaneseq
      %v401 = vshrl.u32 %v400, 7
      %v402 = vadd.s32 %v401, 8
      %v403 = vperm.slane %v300, 0
      %vm404 = vcmp.eq.s32.totalorder %v401, %v403
      %vm405 = vcmp.eq.s32.totalorder %v402, %v403
      %v406 = vsel %vm404, 1, 0
      %v407 = vsel %vm405, 1, 0
      %v408 = vcvt.s32.f32 %v406
      %v409 = vcvt.s32.f32 %v407
      %v410 = vperm.slane %v306, 0
      %v411 = vmul.f32 %v408, %v410
      %v412 = vmul.f32 %v409, %v410
      %v413 = vpack.c.bf16 %v412, %v411
      %v414 = vpack.c.bf16 %v393, %v391
      %v415 = vpack.c.bf16 %v398, %v396
      %v417 = vsel %vm327, %v413, 0
      %419 = vmatpush.bf16.msra.mxu0 0
      %420 = vmatpush.bf16.msra.mxu0 0
      %421 = vmatpush.bf16.msra.mxu0 0
      %422 = vmatpush.bf16.msra.mxu0 0
      %423 = vmatpush.bf16.msra.mxu0 0
      %424 = vmatpush.bf16.msra.mxu0 0
      %425 = vmatpush.bf16.msra.mxu0 %v415
      %426 = vmatpush.bf16.msra.mxu0 %v414
      %427 = vmatmul.bf16.gmra.mxu0 %v417
      %v428 = vpop.f32.mrf.mxu0
      %v429 = vadd.f32 %v341, %v428
      %v430 = vpop.f32.mrf.mxu0
      %v431 = vadd.f32 %v343, %v430
      %432 = vdwg.mxu0
      %v433 = vsel %vm327, %v411, 0.0
      %434 = vadd.xlane.f32.xlu0 %v433
      %v435 = vpop.xlane.xlu0 %434
      %v436 = vsel %vm327, %v412, 0.0
      %437 = vadd.xlane.f32.xlu0 %v436
      %v438 = vpop.xlane.xlu0 %437
      %v439 = vadd.f32 %v435, 1.0
      %v440 = vadd.f32 %v438, 1.0
      %v441 = vmax.f32 %v439, 1e-12
      %v442 = vmax.f32 %v440, 1e-12
      %v443 = vrcp.pop %v441
      %v444 = vrcp.pop %v442
      %v445 = vmul.f32 %v429, %v443
      %v446 = vmul.f32 %v431, %v444
      %v447 = vperm.slane %v295, 0
      %v448 = vadd.f32 %v445, %v447
      %v449 = vadd.f32 %v446, %v447
      %v450 = vmax.f32 %v448, 0.0
      %v451 = vmax.f32 %v449, 0.0
      %v452 = vperm.slane %v301, 0
      %vm453 = vcmp.eq.s32.totalorder %v401, %v452
      %v454 = vsel %vm453, 1, 0
      %v455 = vcvt.s32.f32 %v454
      %v456 = vsel %vm374, %v455, 0.0
      %457 = vadd.xlane.f32.xlu0 %v456
      %v458 = vpop.xlane.xlu0 %457
      %v459 = vmax.f32 %v458, 1.0
      %v460 = vrcp.pop %v459
      %v461 = vmul.f32 %v455, %v460
      %v462 = vpack.c.bf16 %v461, %v461
      %v463 = vpack.c.bf16 %v451, %v450
      %v465 = vsel %vm374, %v462, 0
      %467 = vmatpush.bf16.msra.mxu0 0
      %468 = vmatpush.bf16.msra.mxu0 0
      %469 = vmatpush.bf16.msra.mxu0 0
      %470 = vmatpush.bf16.msra.mxu0 0
      %471 = vmatpush.bf16.msra.mxu0 0
      %472 = vmatpush.bf16.msra.mxu0 0
      %473 = vmatpush.bf16.msra.mxu0 0
      %474 = vmatpush.bf16.msra.mxu0 %v463
      %475 = vmatmul.bf16.gmra.mxu0 %v465
      %v476 = vpop.f32.mrf.mxu0
      %v477 = vadd.f32 %v307, %v476
      %v478 = vpop.f32.mrf.mxu0
      %479 = vdwg.mxu0
      %v480 = vpack.c.bf16 %v477, %v477
      %v481 = vperm.slane %v297, 0
      %v487 = vunpack.c.l.b16 %v285
      %v488 = vunpack.c.l.b16 %v286
      %v489 = vunpack.c.l.b16 %v287
      %v490 = vunpack.c.l.b16 %v288
      %v491 = vunpack.c.l.b16 %v289
      %v492 = vpack.c.b16 %v488, %v487
      %v493 = vpack.c.b16 %v490, %v489
      %v494 = vpack.c.b16 %v491, %v491
      %vm497 = vcmask 326656
      %v499 = vsel %vm497, %v480, 0
      %vm501 = vcmask 1043456
      %v503 = vsel %vm501, %v494, 0
      %505 = vmatpush.bf16.msra.mxu0 0
      %506 = vmatpush.bf16.msra.mxu0 0
      %507 = vmatpush.bf16.msra.mxu0 0
      %508 = vmatpush.bf16.msra.mxu0 0
      %509 = vmatpush.bf16.msra.mxu0 0
      %510 = vmatpush.bf16.msra.mxu0 %v503
      %511 = vmatpush.bf16.msra.mxu0 %v493
      %512 = vmatpush.bf16.msra.mxu0 %v492
      %513 = vmatmul.bf16.gmra.mxu0 %v499
      %v514 = vpop.f32.mrf.mxu0
      %v515 = vadd.f32 %v481, %v514
      %v516 = vpop.f32.mrf.mxu0
      %517 = vdwg.mxu0
      %v518 = vmax.f32 %v515, 0.0
      %v519 = vpack.c.bf16 %v518, %v518
      %v520 = vperm.slane %v299, 0
      %v525 = vunpack.c.l.b16 %v290
      %v526 = vunpack.c.l.b16 %v291
      %v527 = vunpack.c.l.b16 %v292
      %v528 = vunpack.c.l.b16 %v293
      %v529 = vpack.c.b16 %v526, %v525
      %v530 = vpack.c.b16 %v528, %v527
      %v534 = vsel %vm327, %v519, 0
      %536 = vmatpush.bf16.msra.mxu0 0
      %537 = vmatpush.bf16.msra.mxu0 0
      %538 = vmatpush.bf16.msra.mxu0 0
      %539 = vmatpush.bf16.msra.mxu0 0
      %540 = vmatpush.bf16.msra.mxu0 0
      %541 = vmatpush.bf16.msra.mxu0 0
      %542 = vmatpush.bf16.msra.mxu0 %v530
      %543 = vmatpush.bf16.msra.mxu0 %v529
      %544 = vmatmul.bf16.gmra.mxu0 %v534
      %v545 = vpop.f32.mrf.mxu0
      %v546 = vadd.f32 %v520, %v545
      %v547 = vpop.f32.mrf.mxu0
      %548 = vdwg.mxu0
      %549 = vst [vmem:[%s279] sm:$0xff] %v546
      %p550 = scmp.lt.s32.totalorder %s16, 7
      %s551 = scalar_select %p550, %s16, 7
      %s552 = smul.addr %s551, 8
      %s553 = scalar_lea.vmem %s5, %s552
      // Predicated region
      $region41: #{gnn_forward_batched.1} parent=39 // pred_check
        %p554 = pneg %p159
      $region42: #{gnn_forward_batched.1} parent=39 // pred_check_branch
        %556 = sbr.rel (%p554) target = $region44
      $region43: #{gnn_forward_batched.1} parent=39 // pred_region
        _
      $region44: #{gnn_forward_batched.1} parent=39 // pred_fallthru
        _
    $region40: #{gnn_forward_batched.1} parent=5 // pred_fallthru
      _
    %p557 = scmp.le.s32.totalorder 2, %s11
    // Predicated region
    $region45: #{gnn_forward_batched.1} parent=5 // pred_check
      %p558 = pneg %p557
    $region46: #{gnn_forward_batched.1} parent=5 // pred_check_branch
      %560 = sbr.rel (%p558) target = $region48
    $region47: #{gnn_forward_batched.1} parent=5 // pred_region
      %s561 = ssub.s32 %s11, 2
      // Predicated region
      $region49: #{gnn_forward_batched.1} parent=47 // pred_check
        %p562 = pneg %p165
      $region50: #{gnn_forward_batched.1} parent=47 // pred_check_branch
        %564 = sbr.rel (%p562) target = $region52
      $region51: #{gnn_forward_batched.1} parent=47 // pred_region
        %p565 = scmp.lt.s32.totalorder %s17, 7
        %s566 = scalar_select %p565, %s17, 7
        %s567 = smul.addr %s566, 8
        %s568 = scalar_lea.vmem %s5, %s567
      $region52: #{gnn_forward_batched.1} parent=47 // pred_fallthru
        _
    $region48: #{gnn_forward_batched.1} parent=5 // pred_fallthru
      _
  $region6: #{gnn_forward_batched.1} parent=0 // loop_footer
    %s15 = sadd.s32 1, %s11
  $region7: #{gnn_forward_batched.1} parent=0 // loop_footer_branch
    %10 = sbr.rel target = $region3
  $region8: #{gnn_forward_batched.1} parent=0 // loop_exit
    _

</llo_original>
